<compile_context>
chip_gen: v7x
topology: tpu7x:2x2x1
jax: 0.10.0
libtpu: 0.0.40
codegen_flags: <defaults>
</compile_context>

<pallas_src>
import functools
import math

import jax
import jax.numpy as jnp
from jax.experimental import pallas as pl
from jax.experimental.pallas import tpu as pltpu


def _focal_loss_kernel(x_ref, t_ref, o_ref, *, alpha, gamma):
    # Pure elementwise hot path; compute in f32 regardless of input dtype
    # (v5e has no bf16 VALU) and cast only on the store.
    x = x_ref[...].astype(jnp.float32)
    t = t_ref[...].astype(jnp.float32)

    # sigmoid(x) = 0.5 * (1 + tanh(x/2)): single EUP op, full precision,
    # no divide/reciprocal needed.
    p = 0.5 * (1.0 + jnp.tanh(0.5 * x))

    # Numerically stable BCE-with-logits, reusing e = exp(-|x|):
    #   ce = max(x, 0) - x*t + log1p(exp(-|x|))
    e = jnp.exp(-jnp.abs(x))
    ce = jnp.maximum(x, 0.0) - x * t + jnp.log1p(e)

    p_t = p * t + (1.0 - p) * (1.0 - t)
    q = 1.0 - p_t                      # in [0, 1]
    if gamma == 2.0:                   # common case: 1 VALU mul, no pow
        focal = q * q
    elif gamma == 1.0:
        focal = q
    elif gamma == 0.0:
        focal = 1.0
    else:                              # general gamma: log+exp on the EUP
        focal = q ** gamma

    loss = ce * focal
    if alpha >= 0.0:
        loss = (alpha * t + (1.0 - alpha) * (1.0 - t)) * loss

    o_ref[...] = loss.astype(o_ref.dtype)


def _round_up(a, b):
    return ((a + b - 1) // b) * b


def focal_loss_pallas(inputs, targets, alpha=0.25, gamma=2.0, reduction="none",
                      *, lane=1024, row_tile=512):
    """inputs/targets: (B, C, *spatial). Returns (B, C, prod(spatial)) for
    reduction='none', or a scalar for 'mean' / 'sum'."""
    B, C = inputs.shape[:2]
    spatial = math.prod(inputs.shape[2:]) if inputs.ndim > 2 else 1
    total = B * C * spatial
    out_dtype = inputs.dtype

    x = inputs.reshape(-1)
    t = targets.reshape(-1)

    # Lane-dense slab (rows_p, lane); lane chosen independently of H*W so any
    # spatial size works. Pad the flat tail with zeros (sliced off afterward).
    rows = -(-total // lane)
    tm = row_tile if rows >= row_tile else _round_up(rows, 8)
    rows_p = _round_up(rows, tm)
    padded = rows_p * lane
    if padded != total:
        x = jnp.pad(x, (0, padded - total))
        t = jnp.pad(t, (0, padded - total))
    x = x.reshape(rows_p, lane)
    t = t.reshape(rows_p, lane)

    grid = (rows_p // tm,)
    blk = pl.BlockSpec((tm, lane), lambda i: (i, 0))

    kern = functools.partial(_focal_loss_kernel,
                             alpha=float(alpha), gamma=float(gamma))

    out = pl.pallas_call(
        kern,
        out_shape=jax.ShapeDtypeStruct((rows_p, lane), out_dtype),
        grid_spec=pltpu.PrefetchScalarGridSpec(
            num_scalar_prefetch=0,
            grid=grid,
            in_specs=[blk, blk],
            out_specs=blk,
        ),
        compiler_params=pltpu.CompilerParams(
            dimension_semantics=("parallel",)),
    )(x, t)

    out = out.reshape(-1)
    if padded != total:
        out = out[:total]
    out = out.reshape(B, C, spatial)

    # TODO(synk): for reduction='mean'/'sum', fuse the reduction into the
    # kernel (partial sums in VMEM scratch + pl.when finalize) to skip writing
    # the full (B, C, N) output; module default is reduction='none'.
    if reduction == "mean":
        return jnp.mean(out)
    if reduction == "sum":
        return jnp.sum(out)
    return out


def _reference(logits, targets, alpha=0.25, gamma=2.0):
    B, C = logits.shape[:2]
    x = logits.reshape(B, C, -1).astype(jnp.float32)
    t = targets.reshape(B, C, -1).astype(jnp.float32)
    p = jax.nn.sigmoid(x)
    ce = jnp.maximum(x, 0.0) - x * t + jnp.log1p(jnp.exp(-jnp.abs(x)))
    p_t = p * t + (1.0 - p) * (1.0 - t)
    loss = ce * (1.0 - p_t) ** gamma
    return (alpha * t + (1.0 - alpha) * (1.0 - t)) * loss


if __name__ == "__main__":
    key = jax.random.PRNGKey(0)
    k1, k2, k3, k4 = jax.random.split(key, 4)

    # Case 1: spatial size divisible by the lane tile (no padding path).
    B, C, H, W = 2, 4, 16, 16
    logits = jax.random.normal(k1, (B, C, H, W), dtype=jnp.float32)
    targets = (jax.random.uniform(k2, (B, C, H, W)) > 0.5).astype(jnp.float32)

    loss = focal_loss_pallas(logits, targets, alpha=0.25, gamma=2.0,
                             reduction="none")
    loss = jax.block_until_ready(loss)
    ref = _reference(logits, targets)
    assert loss.shape == (B, C, H * W)
    assert jnp.allclose(loss, ref, atol=2e-5, rtol=1e-5)

    # Case 2: awkward spatial size (13x13) exercising the pad/slice path.
    H2, W2 = 13, 13
    logits2 = jax.random.normal(k3, (B, C, H2, W2), dtype=jnp.float32)
    targets2 = (jax.random.uniform(k4, (B, C, H2, W2)) > 0.5).astype(jnp.float32)

    loss2 = focal_loss_pallas(logits2, targets2, alpha=0.25, gamma=2.0,
                              reduction="none")
    loss2 = jax.block_until_ready(loss2)
    ref2 = _reference(logits2, targets2)
    assert loss2.shape == (B, C, H2 * W2)
    assert jnp.allclose(loss2, ref2, atol=2e-5, rtol=1e-5)

    print("KERNEL_OK")
</pallas_src>

<mosaic_0001>
module attributes {stable_mosaic.version = 11 : i64} {
  func.func @_focal_loss_kernel(%arg0: i32, %arg1: memref<8x1024xf32, #tpu.memory_space<vmem>>, %arg2: memref<8x1024xf32, #tpu.memory_space<vmem>>, %arg3: memref<8x1024xf32, #tpu.memory_space<vmem>>) attributes {dimension_semantics = [#tpu.dimension_semantics<parallel>], iteration_bounds = array<i64: 1>, scalar_prefetch = 0 : i64, scratch_operands = 0 : i64, tpu.core_type = #tpu.core_type<tc>, window_params = [{transform_indices = @transform_0, window_bounds = array<i64: 8, 1024>}, {transform_indices = @transform_1, window_bounds = array<i64: 8, 1024>}, {transform_indices = @transform_2, window_bounds = array<i64: 8, 1024>}]} {
    %c0 = arith.constant 0 : index
    %c0_0 = arith.constant 0 : index
    %0 = vector.load %arg1[%c0, %c0_0] : memref<8x1024xf32, #tpu.memory_space<vmem>>, vector<8x1024xf32>
    %c0_1 = arith.constant 0 : index
    %c0_2 = arith.constant 0 : index
    %1 = vector.load %arg2[%c0_1, %c0_2] : memref<8x1024xf32, #tpu.memory_space<vmem>>, vector<8x1024xf32>
    %cst = arith.constant 5.000000e-01 : f32
    %2 = vector.broadcast %cst : f32 to vector<8x1024xf32>
    %3 = arith.mulf %2, %0 : vector<8x1024xf32>
    %4 = math.tanh %3 : vector<8x1024xf32>
    %cst_3 = arith.constant 1.000000e+00 : f32
    %5 = vector.broadcast %cst_3 : f32 to vector<8x1024xf32>
    %6 = arith.addf %5, %4 : vector<8x1024xf32>
    %cst_4 = arith.constant 5.000000e-01 : f32
    %7 = vector.broadcast %cst_4 : f32 to vector<8x1024xf32>
    %8 = arith.mulf %7, %6 : vector<8x1024xf32>
    %9 = math.absf %0 : vector<8x1024xf32>
    %cst_5 = arith.constant 0.000000e+00 : f32
    %10 = vector.broadcast %cst_5 : f32 to vector<8x1024xf32>
    %11 = arith.subf %10, %9 : vector<8x1024xf32>
    %12 = math.exp %11 : vector<8x1024xf32>
    %cst_6 = arith.constant 0.000000e+00 : f32
    %13 = vector.broadcast %cst_6 : f32 to vector<8x1024xf32>
    %14 = arith.maximumf %0, %13 : vector<8x1024xf32>
    %15 = arith.mulf %0, %1 : vector<8x1024xf32>
    %16 = arith.subf %14, %15 : vector<8x1024xf32>
    %17 = math.log1p %12 : vector<8x1024xf32>
    %18 = arith.addf %16, %17 : vector<8x1024xf32>
    %19 = arith.mulf %8, %1 : vector<8x1024xf32>
    %cst_7 = arith.constant 1.000000e+00 : f32
    %20 = vector.broadcast %cst_7 : f32 to vector<8x1024xf32>
    %21 = arith.subf %20, %8 : vector<8x1024xf32>
    %cst_8 = arith.constant 1.000000e+00 : f32
    %22 = vector.broadcast %cst_8 : f32 to vector<8x1024xf32>
    %23 = arith.subf %22, %1 : vector<8x1024xf32>
    %24 = arith.mulf %21, %23 : vector<8x1024xf32>
    %25 = arith.addf %19, %24 : vector<8x1024xf32>
    %cst_9 = arith.constant 1.000000e+00 : f32
    %26 = vector.broadcast %cst_9 : f32 to vector<8x1024xf32>
    %27 = arith.subf %26, %25 : vector<8x1024xf32>
    %28 = arith.mulf %27, %27 : vector<8x1024xf32>
    %29 = arith.mulf %18, %28 : vector<8x1024xf32>
    %cst_10 = arith.constant 2.500000e-01 : f32
    %30 = vector.broadcast %cst_10 : f32 to vector<8x1024xf32>
    %31 = arith.mulf %30, %1 : vector<8x1024xf32>
    %cst_11 = arith.constant 1.000000e+00 : f32
    %32 = vector.broadcast %cst_11 : f32 to vector<8x1024xf32>
    %33 = arith.subf %32, %1 : vector<8x1024xf32>
    %cst_12 = arith.constant 7.500000e-01 : f32
    %34 = vector.broadcast %cst_12 : f32 to vector<8x1024xf32>
    %35 = arith.mulf %34, %33 : vector<8x1024xf32>
    %36 = arith.addf %31, %35 : vector<8x1024xf32>
    %37 = arith.mulf %36, %29 : vector<8x1024xf32>
    %c0_13 = arith.constant 0 : index
    %c0_14 = arith.constant 0 : index
    %38 = vector.load %arg3[%c0_13, %c0_14] : memref<8x1024xf32, #tpu.memory_space<vmem>>, vector<8x1024xf32>
    tpu.vector_store %arg3[%c0_13, %c0_14], %37 {strides = array<i32>} : memref<8x1024xf32, #tpu.memory_space<vmem>>, vector<8x1024xf32>,
    return
  }
  func.func @transform_0(%arg0: i32) -> (i32, i32) {
    %c0_i32 = arith.constant 0 : i32
    %c0_i32_0 = arith.constant 0 : i32
    return %arg0, %c0_i32 : i32, i32
  }
  func.func @transform_1(%arg0: i32) -> (i32, i32) {
    %c0_i32 = arith.constant 0 : i32
    %c0_i32_0 = arith.constant 0 : i32
    return %arg0, %c0_i32 : i32, i32
  }
  func.func @transform_2(%arg0: i32) -> (i32, i32) {
    %c0_i32 = arith.constant 0 : i32
    %c0_i32_0 = arith.constant 0 : i32
    return %arg0, %c0_i32 : i32, i32
  }
}

</mosaic_0001>

<llo_original>
// kernel: tpu_custom_call.1
$region0: #{tpu_custom_call.1}
  #allocation0 [shape = 'u32[]', space=smem, size = 0x4, offset = 0x4, fixed_abs, tag = 'smem constant byte address 0x4 - core index']
  #allocation1 [shape = 'u32[144,128]{1,0:T(1,128)}', space=vmem, size = 0x12000, scoped, tag = 'internal scratch']
  %s0 = inlined_call_operand.hbm [shape: f32[8,1024], index: 0, kind: input, shape index: {}]
  %s1 = inlined_call_operand.hbm [shape: f32[8,1024], index: 1, kind: input, shape index: {}]
  %s2 = inlined_call_operand.hbm [shape: f32[8,1024], index: 2, kind: output, shape index: {}]
  %s3 = sld [smem:[#allocation0]]
  $region26: #{tpu_custom_call.1} parent=0
    _
  %s5 = ssub.s32 1, %s3
  %s6 = scalar_select 0, %s5, %s3
  $region1: #{tpu_custom_call.1} parent=0
    #allocation2 [shape = 'u8[32768]{0}', space=vmem, size = 0x8000, scoped, tag = 'input window, operand 0, single buffered']
    #allocation3 [shape = 's32[1]{0}', space=sflag, size = 0x4, scoped, tag = 'scoped memory for tpu_custom_call.1']
    #allocation4 [shape = 's32[1]{0}', space=sflag, size = 0x4, scoped, tag = 'scoped memory for tpu_custom_call.1']
    #allocation5 [shape = 'u8[32768]{0}', space=vmem, size = 0x8000, scoped, tag = 'input window, operand 1, single buffered']
    #allocation6 [shape = 's32[1]{0}', space=sflag, size = 0x4, scoped, tag = 'scoped memory for tpu_custom_call.1']
    #allocation7 [shape = 'u8[32768]{0}', space=vmem, size = 0x8000, scoped, tag = 'output window, operand 0, single buffered']
    %7 = vsyncpa [#allocation3], 0
    %8 = vsyncpa [#allocation6], 0
    %9 = vsyncpa [#allocation4], 0
    // Predicated region
    $region2: #{tpu_custom_call.1} parent=1 // pred_check
      _
    $region3: #{tpu_custom_call.1} parent=1 // pred_check_branch
      %11 = sbr.rel (0) target = $region5
    $region4: #{tpu_custom_call.1} parent=1 // pred_region
      %s13 = ssub.s32 1024, 1024
      %14 = vsyncadd [#allocation3], %s13
      %s16 = sshll.u32 [#allocation2], 4
      %s17 = int_to_ptr.vmem [resolvable:$true] %s16
      %19 = dma.hbm_to_vmem [thread:$0]  %s0, 1024, %s17, [#allocation3]
    $region5: #{tpu_custom_call.1} parent=1 // pred_fallthru
      _
    // Predicated region
    $region6: #{tpu_custom_call.1} parent=1 // pred_check
      _
    $region7: #{tpu_custom_call.1} parent=1 // pred_check_branch
      %21 = sbr.rel (0) target = $region9
    $region8: #{tpu_custom_call.1} parent=1 // pred_region
      %s23 = ssub.s32 1024, 1024
      %24 = vsyncadd [#allocation6], %s23
      %s26 = sshll.u32 [#allocation5], 4
      %s27 = int_to_ptr.vmem [resolvable:$true] %s26
      %29 = dma.hbm_to_vmem [thread:$0]  %s1, 1024, %s27, [#allocation6]
    $region9: #{tpu_custom_call.1} parent=1 // pred_fallthru
      _
    // Predicated region
    $region10: #{tpu_custom_call.1} parent=1 // pred_check
      _
    $region11: #{tpu_custom_call.1} parent=1 // pred_check_branch
      %31 = sbr.rel (0) target = $region13
    $region12: #{tpu_custom_call.1} parent=1 // pred_region
      %32 = dma.done [#allocation3], 1024
    $region13: #{tpu_custom_call.1} parent=1 // pred_fallthru
      _
    // Predicated region
    $region14: #{tpu_custom_call.1} parent=1 // pred_check
      _
    $region15: #{tpu_custom_call.1} parent=1 // pred_check_branch
      %34 = sbr.rel (0) target = $region17
    $region16: #{tpu_custom_call.1} parent=1 // pred_region
      %35 = dma.done [#allocation6], 1024
    $region17: #{tpu_custom_call.1} parent=1 // pred_fallthru
      _
    %v36 = vld [vmem:[#allocation2] sm:$0xff]
    %v37 = vld [vmem:[#allocation2 + $0x8] sm:$0xff]
    %v38 = vld [vmem:[#allocation2 + $0x10] sm:$0xff]
    %v39 = vld [vmem:[#allocation2 + $0x18] sm:$0xff]
    %v40 = vld [vmem:[#allocation2 + $0x20] sm:$0xff]
    %v41 = vld [vmem:[#allocation2 + $0x28] sm:$0xff]
    %v42 = vld [vmem:[#allocation2 + $0x30] sm:$0xff]
    %v43 = vld [vmem:[#allocation2 + $0x38] sm:$0xff]
    %v44 = vld [vmem:[#allocation5] sm:$0xff]
    %v45 = vld [vmem:[#allocation5 + $0x8] sm:$0xff]
    %v46 = vld [vmem:[#allocation5 + $0x10] sm:$0xff]
    %v47 = vld [vmem:[#allocation5 + $0x18] sm:$0xff]
    %v48 = vld [vmem:[#allocation5 + $0x20] sm:$0xff]
    %v49 = vld [vmem:[#allocation5 + $0x28] sm:$0xff]
    %v50 = vld [vmem:[#allocation5 + $0x30] sm:$0xff]
    %v51 = vld [vmem:[#allocation5 + $0x38] sm:$0xff]
    %v52 = vmul.f32 %v36, 0.5
    %v53 = vmul.f32 %v37, 0.5
    %v54 = vmul.f32 %v38, 0.5
    %v55 = vmul.f32 %v39, 0.5
    %v56 = vmul.f32 %v40, 0.5
    %v57 = vmul.f32 %v41, 0.5
    %v58 = vmul.f32 %v42, 0.5
    %v59 = vmul.f32 %v43, 0.5
    %v60 = vtanh.pop %v52
    %v61 = vtanh.pop %v53
    %v62 = vtanh.pop %v54
    %v63 = vtanh.pop %v55
    %v64 = vtanh.pop %v56
    %v65 = vtanh.pop %v57
    %v66 = vtanh.pop %v58
    %v67 = vtanh.pop %v59
    %v68 = vadd.f32 %v60, 1.0
    %v69 = vadd.f32 %v61, 1.0
    %v70 = vadd.f32 %v62, 1.0
    %v71 = vadd.f32 %v63, 1.0
    %v72 = vadd.f32 %v64, 1.0
    %v73 = vadd.f32 %v65, 1.0
    %v74 = vadd.f32 %v66, 1.0
    %v75 = vadd.f32 %v67, 1.0
    %v76 = vmul.f32 %v68, 0.5
    %v77 = vmul.f32 %v69, 0.5
    %v78 = vmul.f32 %v70, 0.5
    %v79 = vmul.f32 %v71, 0.5
    %v80 = vmul.f32 %v72, 0.5
    %v81 = vmul.f32 %v73, 0.5
    %v82 = vmul.f32 %v74, 0.5
    %v83 = vmul.f32 %v75, 0.5
    %v84 = vand.u32 2147483647, %v36
    %v85 = vand.u32 2147483647, %v37
    %v86 = vand.u32 2147483647, %v38
    %v87 = vand.u32 2147483647, %v39
    %v88 = vand.u32 2147483647, %v40
    %v89 = vand.u32 2147483647, %v41
    %v90 = vand.u32 2147483647, %v42
    %v91 = vand.u32 2147483647, %v43
    %v92 = vsub.f32 0.0, %v84
    %v93 = vsub.f32 0.0, %v85
    %v94 = vsub.f32 0.0, %v86
    %v95 = vsub.f32 0.0, %v87
    %v96 = vsub.f32 0.0, %v88
    %v97 = vsub.f32 0.0, %v89
    %v98 = vsub.f32 0.0, %v90
    %v99 = vsub.f32 0.0, %v91
    %v100 = vmul.f32 %v92, 1.442695
    %v101 = vpow.pop %v100
    %v102 = vmul.f32 %v93, 1.442695
    %v103 = vpow.pop %v102
    %v104 = vmul.f32 %v94, 1.442695
    %v105 = vpow.pop %v104
    %v106 = vmul.f32 %v95, 1.442695
    %v107 = vpow.pop %v106
    %v108 = vmul.f32 %v96, 1.442695
    %v109 = vpow.pop %v108
    %v110 = vmul.f32 %v97, 1.442695
    %v111 = vpow.pop %v110
    %v112 = vmul.f32 %v98, 1.442695
    %v113 = vpow.pop %v112
    %v114 = vmul.f32 %v99, 1.442695
    %v115 = vpow.pop %v114
    %v116 = vmax.f32 %v36, 0.0
    %v117 = vmax.f32 %v37, 0.0
    %v118 = vmax.f32 %v38, 0.0
    %v119 = vmax.f32 %v39, 0.0
    %v120 = vmax.f32 %v40, 0.0
    %v121 = vmax.f32 %v41, 0.0
    %v122 = vmax.f32 %v42, 0.0
    %v123 = vmax.f32 %v43, 0.0
    %v124 = vmul.f32 %v36, %v44
    %v125 = vmul.f32 %v37, %v45
    %v126 = vmul.f32 %v38, %v46
    %v127 = vmul.f32 %v39, %v47
    %v128 = vmul.f32 %v40, %v48
    %v129 = vmul.f32 %v41, %v49
    %v130 = vmul.f32 %v42, %v50
    %v131 = vmul.f32 %v43, %v51
    %v132 = vsub.f32 %v116, %v124
    %v133 = vsub.f32 %v117, %v125
    %v134 = vsub.f32 %v118, %v126
    %v135 = vsub.f32 %v119, %v127
    %v136 = vsub.f32 %v120, %v128
    %v137 = vsub.f32 %v121, %v129
    %v138 = vsub.f32 %v122, %v130
    %v139 = vsub.f32 %v123, %v131
    %v140 = vadd.f32 %v101, 1.0
    %v141 = vlog2.pop %v140
    %v142 = vmul.f32 %v141, 0.6931472
    %v143 = vmul.f32 -0.5, %v101
    %v144 = vadd.f32 %v143, 1.0
    %v145 = vmul.f32 %v144, %v101
    %v146 = vand.u32 2147483647, %v101
    %vm147 = vcmp.lt.f32.partialorder %v146, 0.0004427343
    %v148 = vsel %vm147, %v145, %v142
    %v149 = vadd.f32 %v103, 1.0
    %v150 = vlog2.pop %v149
    %v151 = vmul.f32 %v150, 0.6931472
    %v152 = vmul.f32 -0.5, %v103
    %v153 = vadd.f32 %v152, 1.0
    %v154 = vmul.f32 %v153, %v103
    %v155 = vand.u32 2147483647, %v103
    %vm156 = vcmp.lt.f32.partialorder %v155, 0.0004427343
    %v157 = vsel %vm156, %v154, %v151
    %v158 = vadd.f32 %v105, 1.0
    %v159 = vlog2.pop %v158
    %v160 = vmul.f32 %v159, 0.6931472
    %v161 = vmul.f32 -0.5, %v105
    %v162 = vadd.f32 %v161, 1.0
    %v163 = vmul.f32 %v162, %v105
    %v164 = vand.u32 2147483647, %v105
    %vm165 = vcmp.lt.f32.partialorder %v164, 0.0004427343
    %v166 = vsel %vm165, %v163, %v160
    %v167 = vadd.f32 %v107, 1.0
    %v168 = vlog2.pop %v167
    %v169 = vmul.f32 %v168, 0.6931472
    %v170 = vmul.f32 -0.5, %v107
    %v171 = vadd.f32 %v170, 1.0
    %v172 = vmul.f32 %v171, %v107
    %v173 = vand.u32 2147483647, %v107
    %vm174 = vcmp.lt.f32.partialorder %v173, 0.0004427343
    %v175 = vsel %vm174, %v172, %v169
    %v176 = vadd.f32 %v109, 1.0
    %v177 = vlog2.pop %v176
    %v178 = vmul.f32 %v177, 0.6931472
    %v179 = vmul.f32 -0.5, %v109
    %v180 = vadd.f32 %v179, 1.0
    %v181 = vmul.f32 %v180, %v109
    %v182 = vand.u32 2147483647, %v109
    %vm183 = vcmp.lt.f32.partialorder %v182, 0.0004427343
    %v184 = vsel %vm183, %v181, %v178
    %v185 = vadd.f32 %v111, 1.0
    %v186 = vlog2.pop %v185
    %v187 = vmul.f32 %v186, 0.6931472
    %v188 = vmul.f32 -0.5, %v111
    %v189 = vadd.f32 %v188, 1.0
    %v190 = vmul.f32 %v189, %v111
    %v191 = vand.u32 2147483647, %v111
    %vm192 = vcmp.lt.f32.partialorder %v191, 0.0004427343
    %v193 = vsel %vm192, %v190, %v187
    %v194 = vadd.f32 %v113, 1.0
    %v195 = vlog2.pop %v194
    %v196 = vmul.f32 %v195, 0.6931472
    %v197 = vmul.f32 -0.5, %v113
    %v198 = vadd.f32 %v197, 1.0
    %v199 = vmul.f32 %v198, %v113
    %v200 = vand.u32 2147483647, %v113
    %vm201 = vcmp.lt.f32.partialorder %v200, 0.0004427343
    %v202 = vsel %vm201, %v199, %v196
    %v203 = vadd.f32 %v115, 1.0
    %v204 = vlog2.pop %v203
    %v205 = vmul.f32 %v204, 0.6931472
    %v206 = vmul.f32 -0.5, %v115
    %v207 = vadd.f32 %v206, 1.0
    %v208 = vmul.f32 %v207, %v115
    %v209 = vand.u32 2147483647, %v115
    %vm210 = vcmp.lt.f32.partialorder %v209, 0.0004427343
    %v211 = vsel %vm210, %v208, %v205
    %v212 = vadd.f32 %v132, %v148
    %v213 = vadd.f32 %v133, %v157
    %v214 = vadd.f32 %v134, %v166
    %v215 = vadd.f32 %v135, %v175
    %v216 = vadd.f32 %v136, %v184
    %v217 = vadd.f32 %v137, %v193
    %v218 = vadd.f32 %v138, %v202
    %v219 = vadd.f32 %v139, %v211
    %v220 = vmul.f32 %v76, %v44
    %v221 = vmul.f32 %v77, %v45
    %v222 = vmul.f32 %v78, %v46
    %v223 = vmul.f32 %v79, %v47
    %v224 = vmul.f32 %v80, %v48
    %v225 = vmul.f32 %v81, %v49
    %v226 = vmul.f32 %v82, %v50
    %v227 = vmul.f32 %v83, %v51
    %v228 = vsub.f32 1.0, %v76
    %v229 = vsub.f32 1.0, %v77
    %v230 = vsub.f32 1.0, %v78
    %v231 = vsub.f32 1.0, %v79
    %v232 = vsub.f32 1.0, %v80
    %v233 = vsub.f32 1.0, %v81
    %v234 = vsub.f32 1.0, %v82
    %v235 = vsub.f32 1.0, %v83
    %v236 = vsub.f32 1.0, %v44
    %v237 = vsub.f32 1.0, %v45
    %v238 = vsub.f32 1.0, %v46
    %v239 = vsub.f32 1.0, %v47
    %v240 = vsub.f32 1.0, %v48
    %v241 = vsub.f32 1.0, %v49
    %v242 = vsub.f32 1.0, %v50
    %v243 = vsub.f32 1.0, %v51
    %v244 = vmul.f32 %v228, %v236
    %v245 = vmul.f32 %v229, %v237
    %v246 = vmul.f32 %v230, %v238
    %v247 = vmul.f32 %v231, %v239
    %v248 = vmul.f32 %v232, %v240
    %v249 = vmul.f32 %v233, %v241
    %v250 = vmul.f32 %v234, %v242
    %v251 = vmul.f32 %v235, %v243
    %v252 = vadd.f32 %v220, %v244
    %v253 = vadd.f32 %v221, %v245
    %v254 = vadd.f32 %v222, %v246
    %v255 = vadd.f32 %v223, %v247
    %v256 = vadd.f32 %v224, %v248
    %v257 = vadd.f32 %v225, %v249
    %v258 = vadd.f32 %v226, %v250
    %v259 = vadd.f32 %v227, %v251
    %v260 = vsub.f32 1.0, %v252
    %v261 = vsub.f32 1.0, %v253
    %v262 = vsub.f32 1.0, %v254
    %v263 = vsub.f32 1.0, %v255
    %v264 = vsub.f32 1.0, %v256
    %v265 = vsub.f32 1.0, %v257
    %v266 = vsub.f32 1.0, %v258
    %v267 = vsub.f32 1.0, %v259
    %v268 = vmul.f32 %v260, %v260
    %v269 = vmul.f32 %v261, %v261
    %v270 = vmul.f32 %v262, %v262
    %v271 = vmul.f32 %v263, %v263
    %v272 = vmul.f32 %v264, %v264
    %v273 = vmul.f32 %v265, %v265
    %v274 = vmul.f32 %v266, %v266
    %v275 = vmul.f32 %v267, %v267
    %v276 = vmul.f32 %v212, %v268
    %v277 = vmul.f32 %v213, %v269
    %v278 = vmul.f32 %v214, %v270
    %v279 = vmul.f32 %v215, %v271
    %v280 = vmul.f32 %v216, %v272
    %v281 = vmul.f32 %v217, %v273
    %v282 = vmul.f32 %v218, %v274
    %v283 = vmul.f32 %v219, %v275
    %v284 = vmul.f32 %v44, 0.25
    %v285 = vmul.f32 %v45, 0.25
    %v286 = vmul.f32 %v46, 0.25
    %v287 = vmul.f32 %v47, 0.25
    %v288 = vmul.f32 %v48, 0.25
    %v289 = vmul.f32 %v49, 0.25
    %v290 = vmul.f32 %v50, 0.25
    %v291 = vmul.f32 %v51, 0.25
    %v292 = vmul.f32 %v236, 0.75
    %v293 = vmul.f32 %v237, 0.75
    %v294 = vmul.f32 %v238, 0.75
    %v295 = vmul.f32 %v239, 0.75
    %v296 = vmul.f32 %v240, 0.75
    %v297 = vmul.f32 %v241, 0.75
    %v298 = vmul.f32 %v242, 0.75
    %v299 = vmul.f32 %v243, 0.75
    %v300 = vadd.f32 %v284, %v292
    %v301 = vadd.f32 %v285, %v293
    %v302 = vadd.f32 %v286, %v294
    %v303 = vadd.f32 %v287, %v295
    %v304 = vadd.f32 %v288, %v296
    %v305 = vadd.f32 %v289, %v297
    %v306 = vadd.f32 %v290, %v298
    %v307 = vadd.f32 %v291, %v299
    %v308 = vmul.f32 %v300, %v276
    %v309 = vmul.f32 %v301, %v277
    %v310 = vmul.f32 %v302, %v278
    %v311 = vmul.f32 %v303, %v279
    %v312 = vmul.f32 %v304, %v280
    %v313 = vmul.f32 %v305, %v281
    %v314 = vmul.f32 %v306, %v282
    %v315 = vmul.f32 %v307, %v283
    %316 = vst [vmem:[#allocation7] sm:$0xff] %v308
    %317 = vst [vmem:[#allocation7 + $0x8] sm:$0xff] %v309
    %318 = vst [vmem:[#allocation7 + $0x10] sm:$0xff] %v310
    %319 = vst [vmem:[#allocation7 + $0x18] sm:$0xff] %v311
    %320 = vst [vmem:[#allocation7 + $0x20] sm:$0xff] %v312
    %321 = vst [vmem:[#allocation7 + $0x28] sm:$0xff] %v313
    %322 = vst [vmem:[#allocation7 + $0x30] sm:$0xff] %v314
    %323 = vst [vmem:[#allocation7 + $0x38] sm:$0xff] %v315
    // Predicated region
    $region18: #{tpu_custom_call.1} parent=1 // pred_check
      _
    $region19: #{tpu_custom_call.1} parent=1 // pred_check_branch
      %325 = sbr.rel (0) target = $region21
    $region20: #{tpu_custom_call.1} parent=1 // pred_region
      %s327 = ssub.s32 1024, 1024
      %328 = vsyncadd [#allocation4], %s327
      %s330 = sshll.u32 [#allocation7], 4
      %s331 = int_to_ptr.vmem [resolvable:$true] %s330
      %333 = dma.vmem_to_hbm [thread:$0]  %s331, 1024, %s2, [#allocation4]
    $region21: #{tpu_custom_call.1} parent=1 // pred_fallthru
      _
    // Predicated region
    $region22: #{tpu_custom_call.1} parent=1 // pred_check
      _
    $region23: #{tpu_custom_call.1} parent=1 // pred_check_branch
      %335 = sbr.rel (0) target = $region25
    $region24: #{tpu_custom_call.1} parent=1 // pred_region
      %336 = dma.done [#allocation4], 1024
    $region25: #{tpu_custom_call.1} parent=1 // pred_fallthru
      _
    %337 = vsyncpa [#allocation3], 1
    %338 = vsyncpa [#allocation6], 1
    %339 = vsyncpa [#allocation4], 1

</llo_original>
